<compile_context>
chip_gen: v6e
topology: v6e:2x2x1
jax: 0.10.0
libtpu: 0.0.40
codegen_flags: <defaults>
</compile_context>

<pallas_src>
import jax
import jax.numpy as jnp
from jax import lax
from jax.experimental import pallas as pl
from jax.experimental.pallas import tpu as pltpu

RRELU_EVAL_SLOPE = (1.0 / 8.0 + 1.0 / 3.0) / 2.0  # 0.2291666...

# Hard cap on tile rows: 2 * tb * 512 B (x double-buffer, lane-padded) plus the
# output buffers stays comfortably inside v7x's 64 MiB VMEM.
_MAX_TILE_ROWS = 24576


def _rrelu_eval(x):
    return jnp.where(x >= 0.0, x, x * RRELU_EVAL_SLOPE)


def _cdiv(a, b):
    return -(-a // b)


def _round_up(n, m):
    return _cdiv(n, m) * m


def _default_target_rows():
    """Per-generation default batch-tile target (safe fallback if unknown)."""
    try:
        kind = jax.devices()[0].device_kind.lower()
    except Exception:
        return 8192
    if "v5 lite" in kind or "v5e" in kind:
        return 8192       # v5e: lower HBM BW, smaller default scoped VMEM
    return 16384          # v6e / v7x


def _choose_tiling(batch, target_rows):
    """Pick (tile_rows, num_tiles, padded_rows) with minimal tail waste."""
    chunks = _cdiv(batch, 128)                       # 128-row chunks
    target_chunks = max(min(target_rows, _MAX_TILE_ROWS) // 128, 1)
    if chunks >= 2:
        # Ensure >= 2 grid steps so both v7x TensorCores get work.
        target_chunks = min(target_chunks, _cdiv(chunks, 2))
    num_tiles = _cdiv(chunks, target_chunks)
    chunks_per_tile = _cdiv(chunks, num_tiles)       # smallest tile for that step count
    num_tiles = _cdiv(chunks, chunks_per_tile)
    tile_rows = chunks_per_tile * 128
    return tile_rows, num_tiles, num_tiles * tile_rows


def _pack_params(params):
    """Pack all weights/biases into one (56, 128) f32 block (8-aligned rows)."""
    (w1, b1), (w2, b2), (w3, b3), (w4, b4) = params
    packed = jnp.zeros((56, 128), jnp.float32)
    packed = packed.at[0:20, 0:28].set(w1).at[0:20, 28:29].set(b1)     # fc1
    packed = packed.at[24:34, 0:20].set(w2).at[24:34, 20:21].set(b2)   # fc2
    packed = packed.at[40:43, 0:10].set(w3).at[40:43, 10:11].set(b3)   # fc3
    packed = packed.at[48:49, 0:3].set(w4).at[48:49, 3:4].set(b4)      # fc4
    return packed


def stock_predictor_kernel(x_ref, w_ref, out_ref):
    x = x_ref[...]                      # (TB, 28) -- batch on sublanes, feats on lanes
    w = w_ref[...]                      # (56, 128) packed weights/biases (same dtype as x)
    dt = x.dtype
    f32 = jnp.float32

    w1 = w[0:20, 0:28]
    b1 = w[0:20, 28:29].astype(f32)
    w2 = w[24:34, 0:20]
    b2 = w[24:34, 20:21].astype(f32)
    w3 = w[40:43, 0:10]
    b3 = w[40:43, 10:11].astype(f32)
    w4 = w[48:49, 0:4].astype(f32)      # cols: [w4_0, w4_1, w4_2, b4]

    # Layer 1 (28 -> 20), transposed orientation: contraction over the 28
    # feature lanes of both operands (A @ B^T), consuming the x tile as loaded.
    h1 = lax.dot_general(w1, x, (((1,), (1,)), ((), ())),
                         preferred_element_type=f32) + b1              # (20, TB) f32
    h1 = _rrelu_eval(h1)
    # dropout(0.1): identity in eval mode

    # Layer 2 (20 -> 10): MXU matmul, N = TB lanes wide.
    h2 = jnp.dot(w2, h1.astype(dt), preferred_element_type=f32) + b2   # (10, TB)
    h2 = _rrelu_eval(h2)
    # dropout(0.1): identity in eval mode

    # Layer 3 (10 -> 3).
    h3 = jnp.dot(w3, h2.astype(dt), preferred_element_type=f32) + b3   # (3, TB)
    h3 = _rrelu_eval(h3)

    # Layer 4 (3 -> 1) on the VPU: 3 broadcast-mul + adds, not worth an MXU trip.
    out_row = (w4[0:1, 0:1] * h3[0:1, :]
               + w4[0:1, 1:2] * h3[1:2, :]
               + w4[0:1, 2:3] * h3[2:3, :]
               + w4[0:1, 3:4])                                         # (1, TB)

    # Lane-dense store: out block is (1, 1, TB).
    out_ref[...] = out_row[None].astype(out_ref.dtype)


def stock_predictor_forward(x, params, *, tile_b=None, use_bf16=False):
    """x: (B, 14, 2) float32 -> (B, 1) float32."""
    B = x.shape[0]
    x2d = x.reshape(B, -1).astype(jnp.float32)                         # (B, 28), free reshape
    assert x2d.shape[1] == 28

    target = tile_b if tile_b is not None else _default_target_rows()
    tb, num_tiles, padded_B = _choose_tiling(B, target)
    if padded_B != B:
        x2d = jnp.pad(x2d, ((0, padded_B - B), (0, 0)))

    in_dtype = jnp.bfloat16 if use_bf16 else jnp.float32
    x_in = x2d.astype(in_dtype)
    w_packed = _pack_params(params).astype(in_dtype)

    # VMEM accounting: x block lane-pads 28 -> 128 lanes; output block
    # sublane-pads 1 -> 8 rows; everything is double-buffered by the pipeline.
    itemsize = jnp.dtype(in_dtype).itemsize
    vmem_bytes = 2 * (tb * 128 * itemsize          # x tile buffers
                      + 8 * tb * 4                 # output tile buffers (f32)
                      + 56 * 128 * itemsize)       # packed weights
    vmem_limit = int(min(max(vmem_bytes + (2 << 20), 32 << 20), 48 << 20))

    out3d = pl.pallas_call(
        stock_predictor_kernel,
        out_shape=jax.ShapeDtypeStruct((num_tiles, 1, tb), jnp.float32),
        grid_spec=pltpu.PrefetchScalarGridSpec(
            num_scalar_prefetch=0,
            grid=(num_tiles,),
            in_specs=[
                pl.BlockSpec((tb, 28), lambda i: (i, 0)),     # x tile
                pl.BlockSpec((56, 128), lambda i: (0, 0)),    # packed weights (VMEM-resident)
            ],
            out_specs=pl.BlockSpec((1, 1, tb), lambda i: (i, 0, 0)),
        ),
        compiler_params=pltpu.CompilerParams(
            dimension_semantics=("parallel",),
            vmem_limit_bytes=vmem_limit),
    )(x_in, w_packed)

    # (num_tiles, 1, tb) -> (padded_B, 1) -> drop pad rows.
    return out3d.reshape(padded_B, 1)[:B]


def init_params(key):
    """Deterministic init mimicking nn.Linear; weights (out, in), biases (out, 1)."""
    sizes = [(28, 20), (20, 10), (10, 3), (3, 1)]
    params = []
    for i, (fan_in, fan_out) in enumerate(sizes):
        kw, kb, key = jax.random.split(jax.random.fold_in(key, i), 3)
        bound = 1.0 / jnp.sqrt(fan_in)
        w = jax.random.uniform(kw, (fan_out, fan_in), jnp.float32, -bound, bound)
        b = jax.random.uniform(kb, (fan_out, 1), jnp.float32, -bound, bound)
        params.append((w, b))
    return params


def reference_forward(x, params):
    x2d = x.reshape(x.shape[0], -1)
    (w1, b1), (w2, b2), (w3, b3), (w4, b4) = params
    h = _rrelu_eval(jnp.dot(x2d, w1.T, preferred_element_type=jnp.float32) + b1.T)
    h = _rrelu_eval(jnp.dot(h, w2.T, preferred_element_type=jnp.float32) + b2.T)
    h = _rrelu_eval(jnp.dot(h, w3.T, preferred_element_type=jnp.float32) + b3.T)
    return jnp.dot(h, w4.T, preferred_element_type=jnp.float32) + b4.T


if __name__ == "__main__":
    key = jax.random.PRNGKey(0)
    kx, kp = jax.random.split(key)

    # Small test batch; 200 exercises the 128-row padding and a 2-step
    # ("parallel") grid, i.e. the multi-tile / pad-row-slicing paths.
    B = 200
    x = jax.random.normal(kx, (B, 14, 2), jnp.float32)   # (batch, 14 features, 2)
    params = init_params(kp)

    out = jax.block_until_ready(stock_predictor_forward(x, params))

    ref = reference_forward(x, params)
    assert out.shape == (B, 1)
    assert jnp.allclose(out, ref, atol=1e-4, rtol=1e-4), "mismatch vs JAX reference"

    print("KERNEL_OK")
</pallas_src>

<mosaic_0001>
module attributes {stable_mosaic.version = 11 : i64} {
  func.func @stock_predictor_kernel(%arg0: i32, %arg1: memref<128x28xf32, #tpu.memory_space<vmem>>, %arg2: memref<56x128xf32, #tpu.memory_space<vmem>>, %arg3: memref<1x1x128xf32, #tpu.memory_space<vmem>>) attributes {dimension_semantics = [#tpu.dimension_semantics<parallel>], iteration_bounds = array<i64: 2>, scalar_prefetch = 0 : i64, scratch_operands = 0 : i64, tpu.core_type = #tpu.core_type<tc>, window_params = [{transform_indices = @transform_0, window_bounds = array<i64: 128, 28>}, {pipeline_mode = #tpu.pipeline_mode<synchronous>, transform_indices = @transform_1, window_bounds = array<i64: 56, 128>}, {transform_indices = @transform_2, window_bounds = array<i64: 1, 1, 128>}]} {
    %c0 = arith.constant 0 : index
    %c0_0 = arith.constant 0 : index
    %0 = vector.load %arg1[%c0, %c0_0] : memref<128x28xf32, #tpu.memory_space<vmem>>, vector<128x28xf32>
    %c0_1 = arith.constant 0 : index
    %c0_2 = arith.constant 0 : index
    %1 = vector.load %arg2[%c0_1, %c0_2] : memref<56x128xf32, #tpu.memory_space<vmem>>, vector<56x128xf32>
    %2 = vector.extract_strided_slice %1 {offsets = [0, 0], sizes = [20, 28], strides = [1, 1]} : vector<56x128xf32> to vector<20x28xf32>
    %3 = vector.extract_strided_slice %1 {offsets = [0, 28], sizes = [20, 1], strides = [1, 1]} : vector<56x128xf32> to vector<20x1xf32>
    %4 = vector.extract_strided_slice %1 {offsets = [24, 0], sizes = [10, 20], strides = [1, 1]} : vector<56x128xf32> to vector<10x20xf32>
    %5 = vector.extract_strided_slice %1 {offsets = [24, 20], sizes = [10, 1], strides = [1, 1]} : vector<56x128xf32> to vector<10x1xf32>
    %6 = vector.extract_strided_slice %1 {offsets = [40, 0], sizes = [3, 10], strides = [1, 1]} : vector<56x128xf32> to vector<3x10xf32>
    %7 = vector.extract_strided_slice %1 {offsets = [40, 10], sizes = [3, 1], strides = [1, 1]} : vector<56x128xf32> to vector<3x1xf32>
    %8 = vector.extract_strided_slice %1 {offsets = [48, 0], sizes = [1, 4], strides = [1, 1]} : vector<56x128xf32> to vector<1x4xf32>
    %cst = arith.constant dense<0.000000e+00> : vector<20x128xf32>
    %9 = tpu.matmul %2, %0, %cst {dimension_numbers = #tpu.dot_dimension_numbers<[1], [1], [0], [0], [0, 0, 1, 0], [], []>} : vector<20x28xf32>, vector<128x28xf32>, vector<20x128xf32> -> vector<20x128xf32>
    %10 = vector.broadcast %3 : vector<20x1xf32> to vector<20x128xf32>
    %11 = arith.addf %9, %10 : vector<20x128xf32>
    %cst_3 = arith.constant 0.000000e+00 : f32
    %12 = vector.broadcast %cst_3 : f32 to vector<20x128xf32>
    %13 = arith.cmpf oge, %11, %12 : vector<20x128xf32>
    %cst_4 = arith.constant 0.229166672 : f32
    %14 = vector.broadcast %cst_4 : f32 to vector<20x128xf32>
    %15 = arith.mulf %11, %14 : vector<20x128xf32>
    %16 = arith.select %13, %11, %15 : vector<20x128xi1>, vector<20x128xf32>
    %cst_5 = arith.constant dense<0.000000e+00> : vector<10x128xf32>
    %17 = tpu.matmul %4, %16, %cst_5 {dimension_numbers = #tpu.dot_dimension_numbers<[1], [0], [0], [1], [0, 0, 1, 1], [], []>} : vector<10x20xf32>, vector<20x128xf32>, vector<10x128xf32> -> vector<10x128xf32>
    %18 = vector.broadcast %5 : vector<10x1xf32> to vector<10x128xf32>
    %19 = arith.addf %17, %18 : vector<10x128xf32>
    %cst_6 = arith.constant 0.000000e+00 : f32
    %20 = vector.broadcast %cst_6 : f32 to vector<10x128xf32>
    %21 = arith.cmpf oge, %19, %20 : vector<10x128xf32>
    %cst_7 = arith.constant 0.229166672 : f32
    %22 = vector.broadcast %cst_7 : f32 to vector<10x128xf32>
    %23 = arith.mulf %19, %22 : vector<10x128xf32>
    %24 = arith.select %21, %19, %23 : vector<10x128xi1>, vector<10x128xf32>
    %cst_8 = arith.constant dense<0.000000e+00> : vector<3x128xf32>
    %25 = tpu.matmul %6, %24, %cst_8 {dimension_numbers = #tpu.dot_dimension_numbers<[1], [0], [0], [1], [0, 0, 1, 1], [], []>} : vector<3x10xf32>, vector<10x128xf32>, vector<3x128xf32> -> vector<3x128xf32>
    %26 = vector.broadcast %7 : vector<3x1xf32> to vector<3x128xf32>
    %27 = arith.addf %25, %26 : vector<3x128xf32>
    %cst_9 = arith.constant 0.000000e+00 : f32
    %28 = vector.broadcast %cst_9 : f32 to vector<3x128xf32>
    %29 = arith.cmpf oge, %27, %28 : vector<3x128xf32>
    %cst_10 = arith.constant 0.229166672 : f32
    %30 = vector.broadcast %cst_10 : f32 to vector<3x128xf32>
    %31 = arith.mulf %27, %30 : vector<3x128xf32>
    %32 = arith.select %29, %27, %31 : vector<3x128xi1>, vector<3x128xf32>
    %33 = vector.extract_strided_slice %8 {offsets = [0, 0], sizes = [1, 1], strides = [1, 1]} : vector<1x4xf32> to vector<1x1xf32>
    %34 = vector.extract_strided_slice %32 {offsets = [0, 0], sizes = [1, 128], strides = [1, 1]} : vector<3x128xf32> to vector<1x128xf32>
    %35 = vector.broadcast %33 : vector<1x1xf32> to vector<1x128xf32>
    %36 = arith.mulf %35, %34 : vector<1x128xf32>
    %37 = vector.extract_strided_slice %8 {offsets = [0, 1], sizes = [1, 1], strides = [1, 1]} : vector<1x4xf32> to vector<1x1xf32>
    %38 = vector.extract_strided_slice %32 {offsets = [1, 0], sizes = [1, 128], strides = [1, 1]} : vector<3x128xf32> to vector<1x128xf32>
    %39 = vector.broadcast %37 : vector<1x1xf32> to vector<1x128xf32>
    %40 = arith.mulf %39, %38 : vector<1x128xf32>
    %41 = arith.addf %36, %40 : vector<1x128xf32>
    %42 = vector.extract_strided_slice %8 {offsets = [0, 2], sizes = [1, 1], strides = [1, 1]} : vector<1x4xf32> to vector<1x1xf32>
    %43 = vector.extract_strided_slice %32 {offsets = [2, 0], sizes = [1, 128], strides = [1, 1]} : vector<3x128xf32> to vector<1x128xf32>
    %44 = vector.broadcast %42 : vector<1x1xf32> to vector<1x128xf32>
    %45 = arith.mulf %44, %43 : vector<1x128xf32>
    %46 = arith.addf %41, %45 : vector<1x128xf32>
    %47 = vector.extract_strided_slice %8 {offsets = [0, 3], sizes = [1, 1], strides = [1, 1]} : vector<1x4xf32> to vector<1x1xf32>
    %48 = vector.broadcast %47 : vector<1x1xf32> to vector<1x128xf32>
    %49 = arith.addf %46, %48 : vector<1x128xf32>
    %50 = vector.shape_cast %49 : vector<1x128xf32> to vector<1x1x128xf32>
    %c0_11 = arith.constant 0 : index
    %c0_12 = arith.constant 0 : index
    %c0_13 = arith.constant 0 : index
    %51 = vector.load %arg3[%c0_11, %c0_12, %c0_13] : memref<1x1x128xf32, #tpu.memory_space<vmem>>, vector<1x1x128xf32>
    tpu.vector_store %arg3[%c0_11, %c0_12, %c0_13], %50 {strides = array<i32>} : memref<1x1x128xf32, #tpu.memory_space<vmem>>, vector<1x1x128xf32>,
    return
  }
  func.func @transform_0(%arg0: i32) -> (i32, i32) {
    %c0_i32 = arith.constant 0 : i32
    %c0_i32_0 = arith.constant 0 : i32
    return %arg0, %c0_i32 : i32, i32
  }
  func.func @transform_1(%arg0: i32) -> (i32, i32) {
    %c0_i32 = arith.constant 0 : i32
    %c0_i32_0 = arith.constant 0 : i32
    %c0_i32_1 = arith.constant 0 : i32
    return %c0_i32, %c0_i32_0 : i32, i32
  }
  func.func @transform_2(%arg0: i32) -> (i32, i32, i32) {
    %c0_i32 = arith.constant 0 : i32
    %c0_i32_0 = arith.constant 0 : i32
    %c0_i32_1 = arith.constant 0 : i32
    return %arg0, %c0_i32, %c0_i32_0 : i32, i32, i32
  }
}

</mosaic_0001>

<llo_original>
// kernel: tpu_custom_call.1
$region0: #{tpu_custom_call.1}
  #allocation0 [shape = 'u32[]', space=smem, size = 0x4, offset = 0x4, fixed_abs, tag = 'smem constant byte address 0x4 - core index']
  #allocation1 [shape = 'u32[144,128]{1,0:T(1,128)}', space=vmem, size = 0x12000, scoped, tag = 'internal scratch']
  %s0 = inlined_call_operand.vmem [shape: f32[256,28], index: 0, kind: input, shape index: {}]
  %s1 = inlined_call_operand.vmem [shape: f32[56,128], index: 1, kind: input, shape index: {}]
  %s2 = inlined_call_operand.hbm [shape: f32[2,1,128], index: 2, kind: output, shape index: {}]
  %s3 = sld [smem:[#allocation0]]
  $region41: #{tpu_custom_call.1} parent=0
    _
  %s5 = ssub.s32 1, %s3
  %s6 = scalar_select 0, %s5, %s3
  $region1: #{tpu_custom_call.1} parent=0
    #allocation2 [shape = 'u8[1024]{0}', space=vmem, size = 0x400, scoped, tag = 'output window, operand 0']
    #allocation3 [shape = 's32[2]{0}', space=sflag, size = 0x8, scoped, tag = 'scoped memory for tpu_custom_call.1']
    %7 = vsyncpa [#allocation3], 0
    %s8 = scalar_lea.sflag [#allocation3], 1
    %9 = vsyncpa %s8, 0
    loop: start=0, step=1, limit=4
    $region2: #{tpu_custom_call.1} parent=1 // loop_pre_header
      _
    $region3: #{tpu_custom_call.1} parent=1 // loop_header
      %s11 = sphi 0, %s15
      %p12 = scmp.ge.s32.totalorder %s11, 4
      %s21 = sphi 0, %s23
      %s24 = sphi 0, %s21
      %s25 = sphi 0, %s24
      %s41 = sphi 0, %s25
      %s45 = sphi 0, %s45
      %s47 = sphi 0, %s45
      %s48 = sphi 0, %s47
      %s62 = sphi 0, %s48
      %s68 = sphi 0, %s70
      %s71 = sphi 0, %s68
      %s72 = sphi 0, %s71
      %s88 = sphi 0, %s72
    $region4: #{tpu_custom_call.1} parent=1 // loop_header_branch
      %14 = sbr.rel (%p12) target = $region8
    $region5: #{tpu_custom_call.1} parent=1 // loop_body
      %s16 = ssub.s32 %s11, 1
      %s17 = ssub.s32 %s11, 2
      %s18 = sadd.s32 %s11, 1
      %s19 = ssub.s32 %s11, %s18
      %p20 = scmp.eq.s32.totalorder %s19, 0
      %s22 = sadd.s32 %s21, 1
      %s23 = scalar_select %p20, %s21, %s22
      %p26 = pneg %p20
      %p27 = scmp.eq.s32.totalorder %s11, 1
      %p28 = por %p26, %p27
      %p29 = scmp.ne.s32.totalorder %s21, %s24
      %p30 = scmp.eq.s32.totalorder %s11, 0
      %p31 = por %p29, %p30
      %p32 = scmp.ne.s32.totalorder %s21, %s24
      %p33 = scmp.eq.s32.totalorder %s16, 1
      %p34 = por %p32, %p33
      %p35 = scmp.ne.s32.totalorder %s24, %s25
      %p36 = scmp.eq.s32.totalorder %s16, 0
      %p37 = por %p35, %p36
      %p38 = scmp.ne.s32.totalorder %s24, %s25
      %p39 = scmp.eq.s32.totalorder %s17, 1
      %p40 = por %p38, %p39
      %p42 = scmp.ne.s32.totalorder %s25, %s41
      %p43 = scmp.eq.s32.totalorder %s17, 0
      %p44 = por %p42, %p43
      %s46 = sadd.s32 %s45, 1
      %p49 = scmp.eq.s32.totalorder %s11, 1
      %p50 = scmp.ne.s32.totalorder %s45, %s47
      %p51 = scmp.eq.s32.totalorder %s11, 0
      %p52 = por %p50, %p51
      %p53 = scmp.ne.s32.totalorder %s45, %s47
      %p54 = scmp.eq.s32.totalorder %s16, 1
      %p55 = por %p53, %p54
      %p56 = scmp.ne.s32.totalorder %s47, %s48
      %p57 = scmp.eq.s32.totalorder %s16, 0
      %p58 = por %p56, %p57
      %p59 = scmp.ne.s32.totalorder %s47, %s48
      %p60 = scmp.eq.s32.totalorder %s17, 1
      %p61 = por %p59, %p60
      %p63 = scmp.ne.s32.totalorder %s48, %s62
      %p64 = scmp.eq.s32.totalorder %s17, 0
      %p65 = por %p63, %p64
      %s66 = ssub.s32 %s11, %s18
      %p67 = scmp.eq.s32.totalorder %s66, 0
      %s69 = sadd.s32 %s68, 1
      %s70 = scalar_select %p67, %s68, %s69
      %p73 = pneg %p67
      %p74 = scmp.eq.s32.totalorder %s11, 1
      %p75 = por %p73, %p74
      %p76 = scmp.ne.s32.totalorder %s68, %s71
      %p77 = scmp.eq.s32.totalorder %s11, 0
      %p78 = por %p76, %p77
      %p79 = scmp.ne.s32.totalorder %s68, %s71
      %p80 = scmp.eq.s32.totalorder %s16, 1
      %p81 = por %p79, %p80
      %p82 = scmp.ne.s32.totalorder %s71, %s72
      %p83 = scmp.eq.s32.totalorder %s16, 0
      %p84 = por %p82, %p83
      %p85 = scmp.ne.s32.totalorder %s71, %s72
      %p86 = scmp.eq.s32.totalorder %s17, 1
      %p87 = por %p85, %p86
      %p89 = scmp.ne.s32.totalorder %s72, %s88
      %p90 = scmp.eq.s32.totalorder %s17, 0
      %p91 = por %p89, %p90
      %p92 = scmp.le.s32.totalorder 1, %s11
      %p93 = scmp.lt.s32.totalorder %s11, 3
      %p94 = pnand %p92, %p93
      %p95 = pneg %p94
      // Predicated region
      $region9: #{tpu_custom_call.1} parent=5 // pred_check
        _
      $region10: #{tpu_custom_call.1} parent=5 // pred_check_branch
        %97 = sbr.rel (%p94) target = $region12
      $region11: #{tpu_custom_call.1} parent=5 // pred_region
        %s98 = ssub.s32 %s11, 1
        // Predicated region
        $region13: #{tpu_custom_call.1} parent=11 // pred_check
          %p99 = pneg %p58
        $region14: #{tpu_custom_call.1} parent=11 // pred_check_branch
          %101 = sbr.rel (%p99) target = $region16
        $region15: #{tpu_custom_call.1} parent=11 // pred_region
          _
        $region16: #{tpu_custom_call.1} parent=11 // pred_fallthru
          _
      $region12: #{tpu_custom_call.1} parent=5 // pred_fallthru
        _
      %p102 = scmp.lt.s32.totalorder %s11, 2
      // Predicated region
      $region17: #{tpu_custom_call.1} parent=5 // pred_check
        %p103 = pneg %p102
      $region18: #{tpu_custom_call.1} parent=5 // pred_check_branch
        %105 = sbr.rel (%p103) target = $region20
      $region19: #{tpu_custom_call.1} parent=5 // pred_region
        // Predicated region
        $region21: #{tpu_custom_call.1} parent=19 // pred_check
          %p106 = pneg %p31
        $region22: #{tpu_custom_call.1} parent=19 // pred_check_branch
          %108 = sbr.rel (%p106) target = $region24
        $region23: #{tpu_custom_call.1} parent=19 // pred_region
          %s109 = smul.u32 16, %s11
          %p110 = scmp.lt.s32.totalorder %s109, 31
          %s111 = scalar_select %p110, %s109, 31
          %s112 = smul.addr %s111, 8
          %s113 = scalar_lea.vmem %s0, %s112
          %s114 = smul.u32 16, %s11
        $region24: #{tpu_custom_call.1} parent=19 // pred_fallthru
          _
      $region20: #{tpu_custom_call.1} parent=5 // pred_fallthru
        _
      %p115 = scmp.le.s32.totalorder 1, %s11
      %p116 = scmp.lt.s32.totalorder %s11, 3
      %p117 = pnand %p115, %p116
      %p118 = pneg %p117
      // Predicated region
      $region25: #{tpu_custom_call.1} parent=5 // pred_check
        _
      $region26: #{tpu_custom_call.1} parent=5 // pred_check_branch
        %120 = sbr.rel (%p117) target = $region28
      $region27: #{tpu_custom_call.1} parent=5 // pred_region
        %s121 = ssub.s32 %s11, 1
        %s122 = smul.u32 16, %s16
        %p123 = scmp.lt.s32.totalorder %s122, 31
        %s124 = scalar_select %p123, %s122, 31
        %s125 = smul.addr %s124, 8
        %s126 = scalar_lea.vmem %s0, %s125
        %p127 = pneg %p37
        %p128 = pneg %p34
        %p129 = pneg %p58
        %p130 = pneg %p55
        %p131 = pneg %p84
        %p132 = pneg %p81
        %s133 = sand.u32 %s71, 1
        %s134 = scalar_lea.sflag [#allocation3], %s133
        %s135 = sand.u32 %s71, 1
        %s136 = scalar_lea.vmem [#allocation2], %s135
        %s137 = smul.u32 16, %s16
        %p138 = scmp.lt.s32.totalorder %s137, 31
        %s139 = scalar_select %p138, %s137, 31
        %s140 = smul.addr %s139, 8
        %s141 = scalar_lea.vmem %s0, %s140
        %s142 = smul.u32 16, %s16
        %v143 = vld [vmem:[%s141] sm:$0xff]
        %v144 = vld [vmem:[%s141 + $0x8] sm:$0xff]
        %v145 = vld [vmem:[%s141 + $0x10] sm:$0xff]
        %v146 = vld [vmem:[%s141 + $0x18] sm:$0xff]
        %v147 = vld [vmem:[%s141 + $0x20] sm:$0xff]
        %v148 = vld [vmem:[%s141 + $0x28] sm:$0xff]
        %v149 = vld [vmem:[%s141 + $0x30] sm:$0xff]
        %v150 = vld [vmem:[%s141 + $0x38] sm:$0xff]
        %v151 = vld [vmem:[%s141 + $0x40] sm:$0xff]
        %v152 = vld [vmem:[%s141 + $0x48] sm:$0xff]
        %v153 = vld [vmem:[%s141 + $0x50] sm:$0xff]
        %v154 = vld [vmem:[%s141 + $0x58] sm:$0xff]
        %v155 = vld [vmem:[%s141 + $0x60] sm:$0xff]
        %v156 = vld [vmem:[%s141 + $0x68] sm:$0xff]
        %v157 = vld [vmem:[%s141 + $0x70] sm:$0xff]
        %v158 = vld [vmem:[%s141 + $0x78] sm:$0xff]
        %v159 = vld [vmem:[%s1] sm:$0xff]
        %v160 = vld [vmem:[%s1 + $0x8] sm:$0xff]
        %v161 = vld [vmem:[%s1 + $0x10] sm:$0xff]
        %v162 = vld [vmem:[%s1 + $0x18] sm:$0xff]
        %v163 = vld [vmem:[%s1 + $0x20] sm:$0xff]
        %v164 = vld [vmem:[%s1 + $0x28] sm:$0xff]
        %v165 = vld [vmem:[%s1 + $0x30] sm:$0xff]
        %167 = vset.pattern.permute.xlu0 28
        %168 = vperm.xlu0 %167, %v159
        %v169 = vpop.permute.xlu0 %168
        %172 = vset.pattern.permute.xlu0 28
        %173 = vperm.xlu0 %172, %v160
        %v174 = vpop.permute.xlu0 %173
        %177 = vset.pattern.permute.xlu0 28
        %178 = vperm.xlu0 %177, %v161
        %v179 = vpop.permute.xlu0 %178
        %vm181 = vcmask 228352
        %v182 = vsel %vm181, %v159, 0
        %v184 = vsel %vm181, %v160, 0
        %v186 = vsel %vm181, %v161, 0
        %v189 = vsel %vm181, %v143, 0
        %v192 = vsel %vm181, %v144, 0
        %v195 = vsel %vm181, %v145, 0
        %v198 = vsel %vm181, %v146, 0
        %v201 = vsel %vm181, %v147, 0
        %v204 = vsel %vm181, %v148, 0
        %v207 = vsel %vm181, %v149, 0
        %v210 = vsel %vm181, %v150, 0
        %v213 = vsel %vm181, %v151, 0
        %v216 = vsel %vm181, %v152, 0
        %v219 = vsel %vm181, %v153, 0
        %v222 = vsel %vm181, %v154, 0
        %v225 = vsel %vm181, %v155, 0
        %v228 = vsel %vm181, %v156, 0
        %v231 = vsel %vm181, %v157, 0
        %v234 = vsel %vm181, %v158, 0
        %236 = vmatprep.subr.mxu0 0.0
        %237 = vmatpush1.xpose.msra.mxu0 %v234
        %238 = vmatprep.subr.mxu0 0.0
        %239 = vmatpush1.xpose.msra.mxu0 %v231
        %240 = vmatprep.subr.mxu0 0.0
        %241 = vmatpush1.xpose.msra.mxu0 %v228
        %242 = vmatprep.subr.mxu0 0.0
        %243 = vmatpush1.xpose.msra.mxu0 %v225
        %244 = vmatprep.subr.mxu0 0.0
        %245 = vmatpush1.xpose.msra.mxu0 %v222
        %246 = vmatprep.subr.mxu0 0.0
        %247 = vmatpush1.xpose.msra.mxu0 %v219
        %248 = vmatprep.subr.mxu0 0.0
        %249 = vmatpush1.xpose.msra.mxu0 %v216
        %250 = vmatprep.subr.mxu0 0.0
        %251 = vmatpush1.xpose.msra.mxu0 %v213
        %252 = vmatprep.subr.mxu0 0.0
        %253 = vmatpush1.xpose.msra.mxu0 %v210
        %254 = vmatprep.subr.mxu0 0.0
        %255 = vmatpush1.xpose.msra.mxu0 %v207
        %256 = vmatprep.subr.mxu0 0.0
        %257 = vmatpush1.xpose.msra.mxu0 %v204
        %258 = vmatprep.subr.mxu0 0.0
        %259 = vmatpush1.xpose.msra.mxu0 %v201
        %260 = vmatprep.subr.mxu0 0.0
        %261 = vmatpush1.xpose.msra.mxu0 %v198
        %262 = vmatprep.subr.mxu0 0.0
        %263 = vmatpush1.xpose.msra.mxu0 %v195
        %264 = vmatprep.subr.mxu0 0.0
        %265 = vmatpush1.xpose.msra.mxu0 %v192
        %266 = vmatprep.subr.mxu0 0.0
        %267 = vmatpush1.xpose.msra.mxu0 %v189
        %268 = vmatprep.subr.mxu0 0.0
        %269 = vmatpush2.xpose.msra.mxu0 0.0
        %270 = vmatprep.subr.mxu0 0.0
        %271 = vmatpush2.xpose.msra.mxu0 0.0
        %272 = vmatprep.subr.mxu0 0.0
        %273 = vmatpush2.xpose.msra.mxu0 0.0
        %274 = vmatprep.subr.mxu0 0.0
        %275 = vmatpush2.xpose.msra.mxu0 0.0
        %276 = vmatprep.subr.mxu0 0.0
        %277 = vmatpush2.xpose.msra.mxu0 0.0
        %278 = vmatprep.subr.mxu0 0.0
        %279 = vmatpush2.xpose.msra.mxu0 0.0
        %280 = vmatprep.subr.mxu0 0.0
        %281 = vmatpush2.xpose.msra.mxu0 0.0
        %282 = vmatprep.subr.mxu0 0.0
        %283 = vmatpush2.xpose.msra.mxu0 0.0
        %284 = vmatprep.subr.mxu0 0.0
        %285 = vmatpush2.xpose.msra.mxu0 0.0
        %286 = vmatprep.subr.mxu0 0.0
        %287 = vmatpush2.xpose.msra.mxu0 0.0
        %288 = vmatprep.subr.mxu0 0.0
        %289 = vmatpush2.xpose.msra.mxu0 0.0
        %290 = vmatprep.subr.mxu0 0.0
        %291 = vmatpush2.xpose.msra.mxu0 0.0
        %292 = vmatprep.subr.mxu0 0.0
        %293 = vmatpush2.xpose.msra.mxu0 0.0
        %294 = vmatprep.subr.mxu0 0.0
        %295 = vmatpush2.xpose.msra.mxu0 0.0
        %296 = vmatprep.subr.mxu0 0.0
        %297 = vmatpush2.xpose.msra.mxu0 0.0
        %298 = vmatprep.subr.mxu0 0.0
        %299 = vmatpush2.xpose.msra.mxu0 0.0
        %300 = vmatprep.mubr.f32.mxu0 0.0
        %301 = vmatmul.mubr.f32.gmra.mxu0 %v182
        %v302 = vpop.f32.mrf.mxu0
        %v303 = vadd.f32 %v169, %v302
        %v304 = vpop.f32.mrf.mxu0
        %305 = vmatprep.mubr.f32.mxu0 0.0
        %306 = vmatmul.mubr.f32.gmra.mxu0 %v184
        %v307 = vpop.f32.mrf.mxu0
        %v308 = vadd.f32 %v174, %v307
        %v309 = vpop.f32.mrf.mxu0
        %310 = vmatprep.mubr.f32.mxu0 0.0
        %311 = vmatmul.mubr.f32.gmra.mxu0 %v186
        %v312 = vpop.f32.mrf.mxu0
        %v313 = vadd.f32 %v179, %v312
        %v314 = vpop.f32.mrf.mxu0
        %315 = vdwg.mxu0
        %vm316 = vcmp.ge.f32.partialorder %v303, 0.0
        %vm317 = vcmp.ge.f32.partialorder %v308, 0.0
        %vm318 = vcmp.ge.f32.partialorder %v313, 0.0
        %v319 = vmul.f32 %v303, 0.22916667
        %v320 = vmul.f32 %v308, 0.22916667
        %v321 = vmul.f32 %v313, 0.22916667
        %v322 = vsel %vm316, %v303, %v319
        %v323 = vsel %vm317, %v308, %v320
        %v324 = vsel %vm318, %v313, %v321
        %326 = vset.pattern.permute.xlu0 20
        %327 = vperm.xlu0 %326, %v162
        %v328 = vpop.permute.xlu0 %327
        %331 = vset.pattern.permute.xlu0 20
        %332 = vperm.xlu0 %331, %v163
        %v333 = vpop.permute.xlu0 %332
        %vm335 = vcmask 162816
        %v336 = vsel %vm335, %v162, 0
        %v338 = vsel %vm335, %v163, 0
        %vm340 = vcmask 1043456
        %v342 = vsel %vm340, %v324, 0
        %344 = vmatprep.subr.mxu0 0.0
        %345 = vmatpush1.msra.mxu0 0.0
        %346 = vmatprep.subr.mxu0 0.0
        %347 = vmatpush1.msra.mxu0 0.0
        %348 = vmatprep.subr.mxu0 0.0
        %349 = vmatpush1.msra.mxu0 0.0
        %350 = vmatprep.subr.mxu0 0.0
        %351 = vmatpush1.msra.mxu0 0.0
        %352 = vmatprep.subr.mxu0 0.0
        %353 = vmatpush1.msra.mxu0 0.0
        %354 = vmatprep.subr.mxu0 0.0
        %355 = vmatpush1.msra.mxu0 0.0
        %356 = vmatprep.subr.mxu0 0.0
        %357 = vmatpush1.msra.mxu0 0.0
        %358 = vmatprep.subr.mxu0 0.0
        %359 = vmatpush1.msra.mxu0 0.0
        %360 = vmatprep.subr.mxu0 0.0
        %361 = vmatpush1.msra.mxu0 0.0
        %362 = vmatprep.subr.mxu0 0.0
        %363 = vmatpush1.msra.mxu0 0.0
        %364 = vmatprep.subr.mxu0 0.0
        %365 = vmatpush1.msra.mxu0 0.0
        %366 = vmatprep.subr.mxu0 0.0
        %367 = vmatpush1.msra.mxu0 0.0
        %368 = vmatprep.subr.mxu0 0.0
        %369 = vmatpush1.msra.mxu0 0.0
        %370 = vmatprep.subr.mxu0 0.0
        %371 = vmatpush1.msra.mxu0 %v342
        %372 = vmatprep.subr.mxu0 0.0
        %373 = vmatpush1.msra.mxu0 %v323
        %374 = vmatprep.subr.mxu0 0.0
        %375 = vmatpush1.msra.mxu0 %v322
        %376 = vmatprep.subr.mxu0 0.0
        %377 = vmatpush2.msra.mxu0 0.0
        %378 = vmatprep.subr.mxu0 0.0
        %379 = vmatpush2.msra.mxu0 0.0
        %380 = vmatprep.subr.mxu0 0.0
        %381 = vmatpush2.msra.mxu0 0.0
        %382 = vmatprep.subr.mxu0 0.0
        %383 = vmatpush2.msra.mxu0 0.0
        %384 = vmatprep.subr.mxu0 0.0
        %385 = vmatpush2.msra.mxu0 0.0
        %386 = vmatprep.subr.mxu0 0.0
        %387 = vmatpush2.msra.mxu0 0.0
        %388 = vmatprep.subr.mxu0 0.0
        %389 = vmatpush2.msra.mxu0 0.0
        %390 = vmatprep.subr.mxu0 0.0
        %391 = vmatpush2.msra.mxu0 0.0
        %392 = vmatprep.subr.mxu0 0.0
        %393 = vmatpush2.msra.mxu0 0.0
        %394 = vmatprep.subr.mxu0 0.0
        %395 = vmatpush2.msra.mxu0 0.0
        %396 = vmatprep.subr.mxu0 0.0
        %397 = vmatpush2.msra.mxu0 0.0
        %398 = vmatprep.subr.mxu0 0.0
        %399 = vmatpush2.msra.mxu0 0.0
        %400 = vmatprep.subr.mxu0 0.0
        %401 = vmatpush2.msra.mxu0 0.0
        %402 = vmatprep.subr.mxu0 0.0
        %403 = vmatpush2.msra.mxu0 0.0
        %404 = vmatprep.subr.mxu0 0.0
        %405 = vmatpush2.msra.mxu0 0.0
        %406 = vmatprep.subr.mxu0 0.0
        %407 = vmatpush2.msra.mxu0 0.0
        %408 = vmatprep.mubr.f32.mxu0 0.0
        %409 = vmatmul.mubr.f32.gmra.mxu0 %v336
        %v410 = vpop.f32.mrf.mxu0
        %v411 = vadd.f32 %v328, %v410
        %v412 = vpop.f32.mrf.mxu0
        %413 = vmatprep.mubr.f32.mxu0 0.0
        %414 = vmatmul.mubr.f32.gmra.mxu0 %v338
        %v415 = vpop.f32.mrf.mxu0
        %v416 = vadd.f32 %v333, %v415
        %v417 = vpop.f32.mrf.mxu0
        %418 = vdwg.mxu0
        %vm419 = vcmp.ge.f32.partialorder %v411, 0.0
        %vm420 = vcmp.ge.f32.partialorder %v416, 0.0
        %v421 = vmul.f32 %v411, 0.22916667
        %v422 = vmul.f32 %v416, 0.22916667
        %v423 = vsel %vm419, %v411, %v421
        %v424 = vsel %vm420, %v416, %v422
        %426 = vset.pattern.permute.xlu0 10
        %427 = vperm.xlu0 %426, %v164
        %v428 = vpop.permute.xlu0 %427
        %vm430 = vcmask 80896
        %v431 = vsel %vm430, %v164, 0
        %vm433 = vcmask 1041408
        %v435 = vsel %vm433, %v424, 0
        %437 = vmatprep.subr.mxu0 0.0
        %438 = vmatpush1.msra.mxu0 0.0
        %439 = vmatprep.subr.mxu0 0.0
        %440 = vmatpush1.msra.mxu0 0.0
        %441 = vmatprep.subr.mxu0 0.0
        %442 = vmatpush1.msra.mxu0 0.0
        %443 = vmatprep.subr.mxu0 0.0
        %444 = vmatpush1.msra.mxu0 0.0
        %445 = vmatprep.subr.mxu0 0.0
        %446 = vmatpush1.msra.mxu0 0.0
        %447 = vmatprep.subr.mxu0 0.0
        %448 = vmatpush1.msra.mxu0 0.0
        %449 = vmatprep.subr.mxu0 0.0
        %450 = vmatpush1.msra.mxu0 0.0
        %451 = vmatprep.subr.mxu0 0.0
        %452 = vmatpush1.msra.mxu0 0.0
        %453 = vmatprep.subr.mxu0 0.0
        %454 = vmatpush1.msra.mxu0 0.0
        %455 = vmatprep.subr.mxu0 0.0
        %456 = vmatpush1.msra.mxu0 0.0
        %457 = vmatprep.subr.mxu0 0.0
        %458 = vmatpush1.msra.mxu0 0.0
        %459 = vmatprep.subr.mxu0 0.0
        %460 = vmatpush1.msra.mxu0 0.0
        %461 = vmatprep.subr.mxu0 0.0
        %462 = vmatpush1.msra.mxu0 0.0
        %463 = vmatprep.subr.mxu0 0.0
        %464 = vmatpush1.msra.mxu0 0.0
        %465 = vmatprep.subr.mxu0 0.0
        %466 = vmatpush1.msra.mxu0 %v435
        %467 = vmatprep.subr.mxu0 0.0
        %468 = vmatpush1.msra.mxu0 %v423
        %469 = vmatprep.subr.mxu0 0.0
        %470 = vmatpush2.msra.mxu0 0.0
        %471 = vmatprep.subr.mxu0 0.0
        %472 = vmatpush2.msra.mxu0 0.0
        %473 = vmatprep.subr.mxu0 0.0
        %474 = vmatpush2.msra.mxu0 0.0
        %475 = vmatprep.subr.mxu0 0.0
        %476 = vmatpush2.msra.mxu0 0.0
        %477 = vmatprep.subr.mxu0 0.0
        %478 = vmatpush2.msra.mxu0 0.0
        %479 = vmatprep.subr.mxu0 0.0
        %480 = vmatpush2.msra.mxu0 0.0
        %481 = vmatprep.subr.mxu0 0.0
        %482 = vmatpush2.msra.mxu0 0.0
        %483 = vmatprep.subr.mxu0 0.0
        %484 = vmatpush2.msra.mxu0 0.0
        %485 = vmatprep.subr.mxu0 0.0
        %486 = vmatpush2.msra.mxu0 0.0
        %487 = vmatprep.subr.mxu0 0.0
        %488 = vmatpush2.msra.mxu0 0.0
        %489 = vmatprep.subr.mxu0 0.0
        %490 = vmatpush2.msra.mxu0 0.0
        %491 = vmatprep.subr.mxu0 0.0
        %492 = vmatpush2.msra.mxu0 0.0
        %493 = vmatprep.subr.mxu0 0.0
        %494 = vmatpush2.msra.mxu0 0.0
        %495 = vmatprep.subr.mxu0 0.0
        %496 = vmatpush2.msra.mxu0 0.0
        %497 = vmatprep.subr.mxu0 0.0
        %498 = vmatpush2.msra.mxu0 0.0
        %499 = vmatprep.subr.mxu0 0.0
        %500 = vmatpush2.msra.mxu0 0.0
        %501 = vmatprep.mubr.f32.mxu0 0.0
        %502 = vmatmul.mubr.f32.gmra.mxu0 %v431
        %v503 = vpop.f32.mrf.mxu0
        %v504 = vadd.f32 %v428, %v503
        %v505 = vpop.f32.mrf.mxu0
        %506 = vdwg.mxu0
        %vm507 = vcmp.ge.f32.partialorder %v504, 0.0
        %v508 = vmul.f32 %v504, 0.22916667
        %v509 = vsel %vm507, %v504, %v508
        %511 = vset.pattern.permute.xlu0 0
        %512 = vperm.xlu0 %511, %v165
        %v513 = vpop.permute.xlu0 %512
        %v515 = vmul.f32 %v513, %v509
        %516 = vset.pattern.permute.xlu0 1
        %517 = vperm.xlu0 %516, %v165
        %v518 = vpop.permute.xlu0 %517
        %v521 = vrot.slane %v509, 1
        %v523 = vmul.f32 %v518, %v521
        %v524 = vadd.f32 %v515, %v523
        %525 = vset.pattern.permute.xlu0 2
        %526 = vperm.xlu0 %525, %v165
        %v527 = vpop.permute.xlu0 %526
        %v529 = vrot.slane %v509, 2
        %v531 = vmul.f32 %v527, %v529
        %v532 = vadd.f32 %v524, %v531
        %533 = vset.pattern.permute.xlu0 3
        %534 = vperm.xlu0 %533, %v165
        %v535 = vpop.permute.xlu0 %534
        %v537 = vadd.f32 %v532, %v535
        %538 = vst [vmem:[%s136] sm:$0x1] %v537
        %s539 = sand.u32 %s71, 1
        %s540 = scalar_lea.sflag [#allocation3], %s539
        %s541 = sand.u32 %s71, 1
        %s542 = scalar_lea.vmem [#allocation2], %s541
        // Predicated region
        $region29: #{tpu_custom_call.1} parent=27 // pred_check
          %p543 = pneg %p81
        $region30: #{tpu_custom_call.1} parent=27 // pred_check_branch
          %545 = sbr.rel (%p543) target = $region32
        $region31: #{tpu_custom_call.1} parent=27 // pred_region
          %s547 = ssub.s32 16, 16
          %548 = vsyncadd %s540, %s547
          %s549 = smul.addr %s16, 16
          %s550 = scalar_lea.hbm %s2, %s549
          %s552 = sshll.u32 %s542, 4
          %s553 = int_to_ptr.vmem [resolvable:$true] %s552
          %555 = dma.vmem_to_hbm [thread:$0]  %s553, 16, %s550, %s540
        $region32: #{tpu_custom_call.1} parent=27 // pred_fallthru
          _
      $region28: #{tpu_custom_call.1} parent=5 // pred_fallthru
        _
      %p556 = scmp.le.s32.totalorder 2, %s11
      // Predicated region
      $region33: #{tpu_custom_call.1} parent=5 // pred_check
        %p557 = pneg %p556
      $region34: #{tpu_custom_call.1} parent=5 // pred_check_branch
        %559 = sbr.rel (%p557) target = $region36
      $region35: #{tpu_custom_call.1} parent=5 // pred_region
        %s560 = ssub.s32 %s11, 2
        // Predicated region
        $region37: #{tpu_custom_call.1} parent=35 // pred_check
          %p561 = pneg %p87
        $region38: #{tpu_custom_call.1} parent=35 // pred_check_branch
          %563 = sbr.rel (%p561) target = $region40
        $region39: #{tpu_custom_call.1} parent=35 // pred_region
          %s564 = sand.u32 %s72, 1
          %s565 = scalar_lea.sflag [#allocation3], %s564
          %s566 = sand.u32 %s72, 1
          %s567 = scalar_lea.vmem [#allocation2], %s566
          %568 = dma.done %s565, 16
        $region40: #{tpu_custom_call.1} parent=35 // pred_fallthru
          _
      $region36: #{tpu_custom_call.1} parent=5 // pred_fallthru
        _
    $region6: #{tpu_custom_call.1} parent=1 // loop_footer
      %s15 = sadd.s32 1, %s11
    $region7: #{tpu_custom_call.1} parent=1 // loop_footer_branch
      %10 = sbr.rel target = $region3
    $region8: #{tpu_custom_call.1} parent=1 // loop_exit
      _
    %569 = vsyncpa [#allocation3], 1
    %s570 = scalar_lea.sflag [#allocation3], 1
    %571 = vsyncpa %s570, 1

</llo_original>
